<compile_context>
chip_gen: v6e
topology: v6e:2x2x1
jax: 0.10.0
libtpu: 0.0.40
codegen_flags: <defaults>
</compile_context>

<pallas_src>
import jax
import jax.numpy as jnp
from jax.experimental import pallas as pl
from jax.experimental.pallas import tpu as pltpu


def _normalize_kernel(mean_ref, inv_std_ref, img_ref, out_ref):
    # img block: (tr, tl).  mean/inv_std are resident (R_pad, 1) vectors; pull
    # out the rows for this block -> (tr, 1), lane-broadcast is free in the VPU.
    tr = img_ref.shape[0]
    r0 = pl.multiple_of(pl.program_id(0) * tr, tr)
    m = mean_ref[pl.ds(r0, tr), :]
    s = inv_std_ref[pl.ds(r0, tr), :]
    x = img_ref[...].astype(jnp.float32)
    out_ref[...] = ((x - m) * s).astype(out_ref.dtype)


def _sublane_multiple(itemsize):
    # Packed dtypes tile sublanes in pairs/quads: f32 -> 8, bf16 -> 16, i8/fp8 -> 32.
    return {4: 8, 2: 16, 1: 32}.get(itemsize, 8)


def _pick_tiles(n_rows, n_lanes, itemsize, sub, target_bytes=4 << 20):
    """Pick (tr, tl). Budget assumes ~4x block bytes of live VMEM buffers."""
    cdiv = lambda a, b: -(-a // b)
    total_bytes = n_rows * n_lanes * itemsize

    # Tiny array: single full-extent block (always layout-legal).
    if total_bytes <= (1 << 20):
        return n_rows, n_lanes

    # Lane axis: keep full extent if a single sublane-group of rows fits the
    # budget; otherwise tile lanes into the largest multiple of 128 that fits.
    if sub * n_lanes * itemsize <= target_bytes:
        tl = n_lanes
    else:
        tl = max((target_bytes // (sub * itemsize)) // 128 * 128, 128)

    # Row axis: largest multiple of `sub` rows that keeps the block in budget.
    tr = max((target_bytes // (tl * itemsize)) // sub * sub, sub)
    tr = min(tr, cdiv(n_rows, sub) * sub)
    if tr >= n_rows:
        tr = n_rows  # full extent is always legal, even if not a multiple of sub

    # v7x megacore: make sure the parallel grid has >= 2 steps on arrays big
    # enough to care, so both TensorCores (and DMA/compute overlap) are used.
    if total_bytes > (2 << 20):
        n_row_blocks = 1 if tr >= n_rows else cdiv(n_rows, tr)
        n_lane_blocks = 1 if tl >= n_lanes else cdiv(n_lanes, tl)
        if n_row_blocks * n_lane_blocks < 2:
            if n_rows > sub:
                tr = max(cdiv(cdiv(n_rows, 2), sub) * sub, sub)
            elif n_lanes > 128:
                tl = max(cdiv(cdiv(n_lanes, 2), 128) * 128, 128)
    return tr, tl


def normalization(img, mean, std, *, donate_img=False):
    """(img - mean) / std with per-channel mean/std, NCHW layout."""
    N, C, H, W = img.shape
    dtype = img.dtype
    itemsize = jnp.dtype(dtype).itemsize
    R, L = N * C, H * W

    # f32 scale/bias regardless of image dtype (matches the f32-promoted divide
    # of the reference more closely for low-precision images).
    mean_c = jnp.asarray(mean, dtype=jnp.float32).reshape(C)
    inv_std_c = 1.0 / jnp.asarray(std, dtype=jnp.float32).reshape(C)

    sub = _sublane_multiple(itemsize)
    tr, tl = _pick_tiles(R, L, itemsize, sub)
    nr = -(-R // tr)
    nl = -(-L // tl)
    R_pad = nr * tr

    # Per-row vectors, padded to the grid-rounded row count so the in-kernel
    # pl.ds slice of the resident vectors is always in bounds.
    mean_rows = jnp.pad(jnp.tile(mean_c, N), (0, R_pad - R)).reshape(R_pad, 1)
    inv_std_rows = jnp.pad(jnp.tile(inv_std_c, N), (0, R_pad - R)).reshape(R_pad, 1)

    img2 = img.reshape(R, L)  # lane-dense 2D view

    block_bytes = tr * tl * itemsize
    # ~4x block (double-buffered image in + out) plus slack for the resident
    # vectors; explicit so v5e's 16 MiB scoped default never bites, and capped
    # under v7x's 64 MiB physical VMEM.
    vmem_limit = int(min(max(4 * block_bytes + (4 << 20), 32 << 20), 64 << 20))

    cost = pl.CostEstimate(
        flops=2 * R * L,
        transcendentals=0,
        bytes_accessed=2 * R * L * itemsize + 2 * R_pad * 4,
    )

    out2 = pl.pallas_call(
        _normalize_kernel,
        out_shape=jax.ShapeDtypeStruct((R, L), dtype),
        grid_spec=pltpu.PrefetchScalarGridSpec(
            num_scalar_prefetch=0,
            grid=(nr, nl),
            in_specs=[
                pl.BlockSpec((R_pad, 1), lambda i, j: (0, 0)),  # mean (resident)
                pl.BlockSpec((R_pad, 1), lambda i, j: (0, 0)),  # inv_std (resident)
                pl.BlockSpec((tr, tl), lambda i, j: (i, j)),    # image block
            ],
            out_specs=pl.BlockSpec((tr, tl), lambda i, j: (i, j)),
        ),
        compiler_params=pltpu.CompilerParams(
            dimension_semantics=("parallel", "parallel"),
            vmem_limit_bytes=vmem_limit,
        ),
        cost_estimate=cost,
        # Optional donation: halves peak HBM footprint when the caller can
        # give up `img` (arg index 2 is the image).
        input_output_aliases={2: 0} if donate_img else {},
    )(mean_rows, inv_std_rows, img2)

    return out2.reshape(N, C, H, W)


if __name__ == "__main__":
    # Classic ImageNet normalization values, extended to C channels.
    N, C, H, W = 2, 4, 16, 16
    base_mean = [0.485, 0.456, 0.406, 0.5]
    base_std = [0.229, 0.224, 0.225, 0.25]
    mean = jnp.array(base_mean[:C], dtype=jnp.float32)
    std = jnp.array(base_std[:C], dtype=jnp.float32)

    key = jax.random.PRNGKey(0)
    img = jax.random.uniform(key, (N, C, H, W), dtype=jnp.float32)

    out = normalization(img, mean, std)
    out = jax.block_until_ready(out)

    # Reference: exact mirror of the PyTorch forward.
    ref = (img - mean.reshape(-1, 1, 1)) / std.reshape(-1, 1, 1)
    assert out.shape == (N, C, H, W)
    # multiply-by-reciprocal differs from exact divide by ~1-2 ulp
    assert jnp.allclose(out, ref, atol=1e-5, rtol=1e-5)

    print("KERNEL_OK")
</pallas_src>

<mosaic_0001>
module attributes {stable_mosaic.version = 11 : i64} {
  func.func @_normalize_kernel(%arg0: i32, %arg1: i32, %arg2: memref<8x1xf32, #tpu.memory_space<vmem>>, %arg3: memref<8x1xf32, #tpu.memory_space<vmem>>, %arg4: memref<8x256xf32, #tpu.memory_space<vmem>>, %arg5: memref<8x256xf32, #tpu.memory_space<vmem>>) attributes {dimension_semantics = [#tpu.dimension_semantics<parallel>, #tpu.dimension_semantics<parallel>], iteration_bounds = array<i64: 1, 1>, scalar_prefetch = 0 : i64, scratch_operands = 0 : i64, tpu.core_type = #tpu.core_type<tc>, window_params = [{pipeline_mode = #tpu.pipeline_mode<synchronous>, transform_indices = @transform_0, window_bounds = array<i64: 8, 1>}, {pipeline_mode = #tpu.pipeline_mode<synchronous>, transform_indices = @transform_1, window_bounds = array<i64: 8, 1>}, {transform_indices = @transform_2, window_bounds = array<i64: 8, 256>}, {transform_indices = @transform_3, window_bounds = array<i64: 8, 256>}]} {
    %c8_i32 = arith.constant 8 : i32
    %0 = arith.muli %arg0, %c8_i32 : i32
    %1 = tpu.assume_multiple %0, 8 : i32
    %2 = arith.index_cast %1 : i32 to index
    %c0 = arith.constant 0 : index
    %3 = vector.load %arg2[%2, %c0] : memref<8x1xf32, #tpu.memory_space<vmem>>, vector<8x1xf32>
    %4 = arith.index_cast %1 : i32 to index
    %c0_0 = arith.constant 0 : index
    %5 = vector.load %arg3[%4, %c0_0] : memref<8x1xf32, #tpu.memory_space<vmem>>, vector<8x1xf32>
    %c0_1 = arith.constant 0 : index
    %c0_2 = arith.constant 0 : index
    %6 = vector.load %arg4[%c0_1, %c0_2] : memref<8x256xf32, #tpu.memory_space<vmem>>, vector<8x256xf32>
    %7 = vector.broadcast %3 : vector<8x1xf32> to vector<8x256xf32>
    %8 = arith.subf %6, %7 : vector<8x256xf32>
    %9 = vector.broadcast %5 : vector<8x1xf32> to vector<8x256xf32>
    %10 = arith.mulf %8, %9 : vector<8x256xf32>
    %c0_3 = arith.constant 0 : index
    %c0_4 = arith.constant 0 : index
    %11 = vector.load %arg5[%c0_3, %c0_4] : memref<8x256xf32, #tpu.memory_space<vmem>>, vector<8x256xf32>
    tpu.vector_store %arg5[%c0_3, %c0_4], %10 {strides = array<i32>} : memref<8x256xf32, #tpu.memory_space<vmem>>, vector<8x256xf32>,
    return
  }
  func.func @transform_0(%arg0: i32, %arg1: i32) -> (i32, i32) {
    %c0_i32 = arith.constant 0 : i32
    %c0_i32_0 = arith.constant 0 : i32
    %c0_i32_1 = arith.constant 0 : i32
    return %c0_i32, %c0_i32_0 : i32, i32
  }
  func.func @transform_1(%arg0: i32, %arg1: i32) -> (i32, i32) {
    %c0_i32 = arith.constant 0 : i32
    %c0_i32_0 = arith.constant 0 : i32
    %c0_i32_1 = arith.constant 0 : i32
    return %c0_i32, %c0_i32_0 : i32, i32
  }
  func.func @transform_2(%arg0: i32, %arg1: i32) -> (i32, i32) {
    %c0_i32 = arith.constant 0 : i32
    return %arg0, %arg1 : i32, i32
  }
  func.func @transform_3(%arg0: i32, %arg1: i32) -> (i32, i32) {
    %c0_i32 = arith.constant 0 : i32
    return %arg0, %arg1 : i32, i32
  }
}

</mosaic_0001>

<llo_original>
// kernel: tpu_custom_call.1
$region0: #{tpu_custom_call.1}
  #allocation0 [shape = 'u32[]', space=smem, size = 0x4, offset = 0x4, fixed_abs, tag = 'smem constant byte address 0x4 - core index']
  #allocation1 [shape = 'u32[144,128]{1,0:T(1,128)}', space=vmem, size = 0x12000, scoped, tag = 'internal scratch']
  %s0 = inlined_call_operand.vmem [shape: f32[8,1], index: 0, kind: input, shape index: {}]
  %s1 = inlined_call_operand.vmem [shape: f32[8,1], index: 1, kind: input, shape index: {}]
  %s2 = inlined_call_operand.vmem [shape: f32[8,256], index: 2, kind: input, shape index: {}]
  %s3 = inlined_call_operand.hbm [shape: f32[8,256], index: 3, kind: output, shape index: {}]
  %s4 = sld [smem:[#allocation0]]
  $region22: #{tpu_custom_call.1} parent=0
    _
  %s6 = ssub.s32 1, %s4
  %s7 = scalar_select 0, %s6, %s4
  $region1: #{tpu_custom_call.1} parent=0
    #allocation2 [shape = 'u8[8192]{0}', space=vmem, size = 0x2000, scoped, tag = 'output window, operand 0, single buffered']
    #allocation3 [shape = 's32[1]{0}', space=sflag, size = 0x4, scoped, tag = 'scoped memory for tpu_custom_call.1']
    %8 = vsyncpa [#allocation3], 0
    // Predicated region
    $region2: #{tpu_custom_call.1} parent=1 // pred_check
      _
    $region3: #{tpu_custom_call.1} parent=1 // pred_check_branch
      %10 = sbr.rel (0) target = $region5
    $region4: #{tpu_custom_call.1} parent=1 // pred_region
      _
    $region5: #{tpu_custom_call.1} parent=1 // pred_fallthru
      _
    // Predicated region
    $region6: #{tpu_custom_call.1} parent=1 // pred_check
      _
    $region7: #{tpu_custom_call.1} parent=1 // pred_check_branch
      %12 = sbr.rel (0) target = $region9
    $region8: #{tpu_custom_call.1} parent=1 // pred_region
      _
    $region9: #{tpu_custom_call.1} parent=1 // pred_fallthru
      _
    // Predicated region
    $region10: #{tpu_custom_call.1} parent=1 // pred_check
      _
    $region11: #{tpu_custom_call.1} parent=1 // pred_check_branch
      %14 = sbr.rel (0) target = $region13
    $region12: #{tpu_custom_call.1} parent=1 // pred_region
      _
    $region13: #{tpu_custom_call.1} parent=1 // pred_fallthru
      _
    %s15 = smul.u32 0, 8
    %s16 = scalar_lea.vmem %s0, %s15
    %v17 = vld [vmem:[%s16] sm:$0xff]
    %s18 = scalar_lea.vmem %s1, %s15
    %v19 = vld [vmem:[%s18] sm:$0xff]
    %v20 = vld [vmem:[%s2] sm:$0xff]
    %v21 = vld [vmem:[%s2 + $0x8] sm:$0xff]
    %23 = vset.pattern.permute.xlu0 0
    %24 = vperm.xlu0 %23, %v17
    %v25 = vpop.permute.xlu0 %24
    %v27 = vsub.f32 %v20, %v25
    %v28 = vsub.f32 %v21, %v25
    %30 = vset.pattern.permute.xlu0 0
    %31 = vperm.xlu0 %30, %v19
    %v32 = vpop.permute.xlu0 %31
    %v34 = vmul.f32 %v27, %v32
    %v35 = vmul.f32 %v28, %v32
    %36 = vst [vmem:[#allocation2] sm:$0xff] %v34
    %37 = vst [vmem:[#allocation2 + $0x8] sm:$0xff] %v35
    // Predicated region
    $region14: #{tpu_custom_call.1} parent=1 // pred_check
      _
    $region15: #{tpu_custom_call.1} parent=1 // pred_check_branch
      %39 = sbr.rel (0) target = $region17
    $region16: #{tpu_custom_call.1} parent=1 // pred_region
      %s41 = ssub.s32 256, 256
      %42 = vsyncadd [#allocation3], %s41
      %s44 = sshll.u32 [#allocation2], 4
      %s45 = int_to_ptr.vmem [resolvable:$true] %s44
      %47 = dma.vmem_to_hbm [thread:$0]  %s45, 256, %s3, [#allocation3]
    $region17: #{tpu_custom_call.1} parent=1 // pred_fallthru
      _
    // Predicated region
    $region18: #{tpu_custom_call.1} parent=1 // pred_check
      _
    $region19: #{tpu_custom_call.1} parent=1 // pred_check_branch
      %49 = sbr.rel (0) target = $region21
    $region20: #{tpu_custom_call.1} parent=1 // pred_region
      %50 = dma.done [#allocation3], 256
    $region21: #{tpu_custom_call.1} parent=1 // pred_fallthru
      _
    %51 = vsyncpa [#allocation3], 1

</llo_original>
